<compile_context>
chip_gen: v5e
topology: v5e:2x2
jax: 0.10.0
libtpu: 0.0.40
codegen_flags: <defaults>
</compile_context>

<pallas_src>
import jax
import jax.numpy as jnp
from jax.experimental import pallas as pl
from jax.experimental.pallas import tpu as pltpu

H_DIM = 16


def _round_up(x, m):
    return ((x + m - 1) // m) * m


def _choose_tile(batch, d, itemsize=4, target_bytes=2 * 1024 * 1024):
    """Batch-tile rows: ~2 MiB of x per tile (amortizes the ~0.35us per-grid-step
    overhead), rounded to 128; shrunk for small batches so the grid still has
    >=2 tiles where possible (v7x megacore)."""
    tb = max(512, target_bytes // (d * itemsize))
    tb = _round_up(tb, 128)
    if batch <= tb:
        tb = max(128, _round_up(pl.cdiv(batch, 2), 128))
    return tb


def reward_model_kernel(x_ref, w1t_ref, b1_ref, w2t_ref, b2_ref, w3_ref, b3_ref, o_ref):
    # x tile: (TB, D) f32 streamed from HBM (auto double-buffered by BlockSpec).
    # Transposed formulation: a single XLU transpose of the input, after which
    # every intermediate is lane-dense and the (1, TB) result stores unmasked.
    xt = x_ref[...].T                                                     # (D, TB)

    # Layer 1: ReLU(W1^T @ x^T + b1)                                     -> (16, TB)
    h1 = jnp.dot(w1t_ref[...], xt, preferred_element_type=jnp.float32) + b1_ref[...]
    h1 = jnp.maximum(h1, 0.0)

    # Layer 2: ReLU(W2^T @ h1 + b2)                                      -> (16, TB)
    h2 = jnp.dot(w2t_ref[...], h1, preferred_element_type=jnp.float32) + b2_ref[...]
    h2 = jnp.maximum(h2, 0.0)

    # Layer 3: w3 . h2 + b3  (reduce over hidden dim only; no cross-row reduction,
    # so garbage rows of a ragged last tile stay confined to their own columns).
    out = jnp.sum(h2 * w3_ref[...], axis=0, keepdims=True) + b3_ref[...]  # (1, TB)

    o_ref[...] = out.reshape(o_ref.shape).astype(o_ref.dtype)             # (1, 1, TB)


def reward_model_forward(x, params, *, tb=None):
    """x: (B, D) float32. Returns (B, 1) float32 matching the PyTorch module."""
    B, D = x.shape
    w1, b1, w2, b2, w3, b3 = (params[k] for k in ("w1", "b1", "w2", "b2", "w3", "b3"))

    # One-time tiny host-side relayouts (a few KB): weights as (out, in),
    # biases as columns, so the kernel does no per-tile weight reshuffling.
    w1t = w1.T                         # (16, D)
    w2t = w2.T                         # (16, 16)
    b1c = b1.reshape(H_DIM, 1)         # (16, 1)
    b2c = b2.reshape(H_DIM, 1)         # (16, 1)
    # w3 is already (16, 1); b3 is already (1, 1).

    if tb is None:
        tb = _choose_tile(B, D, jnp.dtype(x.dtype).itemsize)
    num_tiles = pl.cdiv(B, tb)

    def const(a):
        return pl.BlockSpec(a.shape, lambda i: (0,) * a.ndim)

    flops = 2 * B * (D * H_DIM + H_DIM * H_DIM + H_DIM) + 3 * B * H_DIM
    bytes_accessed = (
        x.size * jnp.dtype(x.dtype).itemsize        # single f32 read of x
        + num_tiles * tb * 4                        # output write (padded slab)
        + 4 * (w1t.size + w2t.size + w3.size + b1.size + b2.size + b3.size)
    )

    out = pl.pallas_call(
        reward_model_kernel,
        out_shape=jax.ShapeDtypeStruct((num_tiles, 1, tb), jnp.float32),
        grid=(num_tiles,),
        in_specs=[
            pl.BlockSpec((tb, D), lambda i: (i, 0)),   # x: one batch tile per step
            const(w1t), const(b1c),                    # weights/biases stay VMEM-resident
            const(w2t), const(b2c),
            const(w3), const(b3),
        ],
        out_specs=pl.BlockSpec((1, 1, tb), lambda i: (i, 0, 0)),  # lane-dense output slab
        compiler_params=pltpu.CompilerParams(
            dimension_semantics=("parallel",),          # megacore-shardable batch axis
            vmem_limit_bytes=48 * 1024 * 1024,          # safe on v7x (64 MiB VMEM) too
        ),
        cost_estimate=pl.CostEstimate(
            flops=flops, transcendentals=0, bytes_accessed=bytes_accessed),
    )(x, w1t, b1c, w2t, b2c, w3, b3)

    # (num_tiles, 1, TB) row-major == rows in order; drop ragged-tail garbage.
    return out.reshape(num_tiles * tb, 1)[:B]


def init_params(key, input_dim):
    """Deterministic init mimicking PyTorch Linear default U(-1/sqrt(fan_in), 1/sqrt(fan_in))."""
    keys = jax.random.split(key, 6)

    def linear(kw, kb, fan_in, fan_out):
        bound = 1.0 / jnp.sqrt(fan_in)
        w = jax.random.uniform(kw, (fan_in, fan_out), jnp.float32, -bound, bound)
        b = jax.random.uniform(kb, (1, fan_out), jnp.float32, -bound, bound)
        return w, b

    w1, b1 = linear(keys[0], keys[1], input_dim, H_DIM)
    w2, b2 = linear(keys[2], keys[3], H_DIM, H_DIM)
    w3, b3 = linear(keys[4], keys[5], H_DIM, 1)
    return dict(w1=w1, b1=b1, w2=w2, b2=b2, w3=w3, b3=b3)


def reference_forward(x, params):
    """Pure-JAX f32 reference matching the PyTorch module."""
    h1 = jnp.maximum(jnp.dot(x, params["w1"]) + params["b1"], 0.0)
    h2 = jnp.maximum(jnp.dot(h1, params["w2"]) + params["b2"], 0.0)
    return jnp.dot(h2, params["w3"]) + params["b3"]


if __name__ == "__main__":
    key = jax.random.PRNGKey(0)
    k_x, k_p, k_x2 = jax.random.split(key, 3)

    input_dim = 32
    params = init_params(k_p, input_dim)

    # Small test: single ragged tile (8 valid rows inside a 128-row tile).
    batch = 8
    x = jax.random.normal(k_x, (batch, input_dim), dtype=jnp.float32)
    out = jax.block_until_ready(reward_model_forward(x, params))
    ref = reference_forward(x, params)
    assert out.shape == (batch, 1), out.shape
    assert jnp.allclose(out, ref, atol=5e-3, rtol=5e-3), "mismatch vs reference (small batch)"

    # Multi-tile test with an explicit small tile: exercises the batch grid,
    # resident weights, megacore-parallel axis, and the ragged last tile.
    tb_small = 256
    batch2 = 2 * tb_small + 40
    x2 = jax.random.normal(k_x2, (batch2, input_dim), dtype=jnp.float32)
    out2 = jax.block_until_ready(reward_model_forward(x2, params, tb=tb_small))
    ref2 = reference_forward(x2, params)
    assert out2.shape == (batch2, 1), out2.shape
    assert jnp.allclose(out2, ref2, atol=5e-3, rtol=5e-3), "mismatch vs reference (multi-tile)"

    print("KERNEL_OK")
</pallas_src>

<mosaic_0001>
module attributes {stable_mosaic.version = 11 : i64} {
  func.func @reward_model_kernel(%arg0: i32, %arg1: memref<128x32xf32, #tpu.memory_space<vmem>>, %arg2: memref<16x32xf32, #tpu.memory_space<vmem>>, %arg3: memref<16x1xf32, #tpu.memory_space<vmem>>, %arg4: memref<16x16xf32, #tpu.memory_space<vmem>>, %arg5: memref<16x1xf32, #tpu.memory_space<vmem>>, %arg6: memref<16x1xf32, #tpu.memory_space<vmem>>, %arg7: memref<1x1xf32, #tpu.memory_space<vmem>>, %arg8: memref<1x1x128xf32, #tpu.memory_space<vmem>>) attributes {dimension_semantics = [#tpu.dimension_semantics<parallel>], iteration_bounds = array<i64: 1>, scalar_prefetch = 0 : i64, scratch_operands = 0 : i64, tpu.core_type = #tpu.core_type<tc>, window_params = [{transform_indices = @transform_0, window_bounds = array<i64: 128, 32>}, {pipeline_mode = #tpu.pipeline_mode<synchronous>, transform_indices = @transform_1, window_bounds = array<i64: 16, 32>}, {pipeline_mode = #tpu.pipeline_mode<synchronous>, transform_indices = @transform_2, window_bounds = array<i64: 16, 1>}, {pipeline_mode = #tpu.pipeline_mode<synchronous>, transform_indices = @transform_3, window_bounds = array<i64: 16, 16>}, {pipeline_mode = #tpu.pipeline_mode<synchronous>, transform_indices = @transform_4, window_bounds = array<i64: 16, 1>}, {pipeline_mode = #tpu.pipeline_mode<synchronous>, transform_indices = @transform_5, window_bounds = array<i64: 16, 1>}, {pipeline_mode = #tpu.pipeline_mode<synchronous>, transform_indices = @transform_6, window_bounds = array<i64: 1, 1>}, {transform_indices = @transform_7, window_bounds = array<i64: 1, 1, 128>}]} {
    %c0 = arith.constant 0 : index
    %c0_0 = arith.constant 0 : index
    %0 = vector.load %arg1[%c0, %c0_0] : memref<128x32xf32, #tpu.memory_space<vmem>>, vector<128x32xf32>
    %1 = tpu.transpose %0, [1, 0] : vector<128x32xf32> -> vector<32x128xf32>
    %c0_1 = arith.constant 0 : index
    %c0_2 = arith.constant 0 : index
    %2 = vector.load %arg2[%c0_1, %c0_2] : memref<16x32xf32, #tpu.memory_space<vmem>>, vector<16x32xf32>
    %cst = arith.constant dense<0.000000e+00> : vector<16x128xf32>
    %3 = tpu.matmul %2, %1, %cst {dimension_numbers = #tpu.dot_dimension_numbers<[1], [0], [0], [1], [0, 0, 1, 1], [], []>} : vector<16x32xf32>, vector<32x128xf32>, vector<16x128xf32> -> vector<16x128xf32>
    %c0_3 = arith.constant 0 : index
    %c0_4 = arith.constant 0 : index
    %4 = vector.load %arg3[%c0_3, %c0_4] : memref<16x1xf32, #tpu.memory_space<vmem>>, vector<16x1xf32>
    %5 = vector.broadcast %4 : vector<16x1xf32> to vector<16x128xf32>
    %6 = arith.addf %3, %5 : vector<16x128xf32>
    %cst_5 = arith.constant 0.000000e+00 : f32
    %7 = vector.broadcast %cst_5 : f32 to vector<16x128xf32>
    %8 = arith.maximumf %6, %7 : vector<16x128xf32>
    %c0_6 = arith.constant 0 : index
    %c0_7 = arith.constant 0 : index
    %9 = vector.load %arg4[%c0_6, %c0_7] : memref<16x16xf32, #tpu.memory_space<vmem>>, vector<16x16xf32>
    %cst_8 = arith.constant dense<0.000000e+00> : vector<16x128xf32>
    %10 = tpu.matmul %9, %8, %cst_8 {dimension_numbers = #tpu.dot_dimension_numbers<[1], [0], [0], [1], [0, 0, 1, 1], [], []>} : vector<16x16xf32>, vector<16x128xf32>, vector<16x128xf32> -> vector<16x128xf32>
    %c0_9 = arith.constant 0 : index
    %c0_10 = arith.constant 0 : index
    %11 = vector.load %arg5[%c0_9, %c0_10] : memref<16x1xf32, #tpu.memory_space<vmem>>, vector<16x1xf32>
    %12 = vector.broadcast %11 : vector<16x1xf32> to vector<16x128xf32>
    %13 = arith.addf %10, %12 : vector<16x128xf32>
    %cst_11 = arith.constant 0.000000e+00 : f32
    %14 = vector.broadcast %cst_11 : f32 to vector<16x128xf32>
    %15 = arith.maximumf %13, %14 : vector<16x128xf32>
    %c0_12 = arith.constant 0 : index
    %c0_13 = arith.constant 0 : index
    %16 = vector.load %arg6[%c0_12, %c0_13] : memref<16x1xf32, #tpu.memory_space<vmem>>, vector<16x1xf32>
    %17 = vector.broadcast %16 : vector<16x1xf32> to vector<16x128xf32>
    %18 = arith.mulf %15, %17 : vector<16x128xf32>
    %cst_14 = arith.constant dense<0.000000e+00> : vector<128xf32>
    %19 = vector.multi_reduction <add>, %18, %cst_14 [0] : vector<16x128xf32> to vector<128xf32>
    %20 = vector.shape_cast %19 : vector<128xf32> to vector<1x128xf32>
    %c0_15 = arith.constant 0 : index
    %c0_16 = arith.constant 0 : index
    %21 = vector.load %arg7[%c0_15, %c0_16] : memref<1x1xf32, #tpu.memory_space<vmem>>, vector<1x1xf32>
    %22 = vector.broadcast %21 : vector<1x1xf32> to vector<1x128xf32>
    %23 = arith.addf %20, %22 : vector<1x128xf32>
    %24 = vector.shape_cast %23 : vector<1x128xf32> to vector<1x1x128xf32>
    %c0_17 = arith.constant 0 : index
    %c0_18 = arith.constant 0 : index
    %c0_19 = arith.constant 0 : index
    %25 = vector.load %arg8[%c0_17, %c0_18, %c0_19] : memref<1x1x128xf32, #tpu.memory_space<vmem>>, vector<1x1x128xf32>
    tpu.vector_store %arg8[%c0_17, %c0_18, %c0_19], %24 {strides = array<i32>} : memref<1x1x128xf32, #tpu.memory_space<vmem>>, vector<1x1x128xf32>,
    return
  }
  func.func @transform_0(%arg0: i32) -> (i32, i32) {
    %c0_i32 = arith.constant 0 : i32
    %c0_i32_0 = arith.constant 0 : i32
    return %arg0, %c0_i32 : i32, i32
  }
  func.func @transform_1(%arg0: i32) -> (i32, i32) {
    %c0_i32 = arith.constant 0 : i32
    %c0_i32_0 = arith.constant 0 : i32
    %c0_i32_1 = arith.constant 0 : i32
    return %c0_i32, %c0_i32_0 : i32, i32
  }
  func.func @transform_2(%arg0: i32) -> (i32, i32) {
    %c0_i32 = arith.constant 0 : i32
    %c0_i32_0 = arith.constant 0 : i32
    %c0_i32_1 = arith.constant 0 : i32
    return %c0_i32, %c0_i32_0 : i32, i32
  }
  func.func @transform_3(%arg0: i32) -> (i32, i32) {
    %c0_i32 = arith.constant 0 : i32
    %c0_i32_0 = arith.constant 0 : i32
    %c0_i32_1 = arith.constant 0 : i32
    return %c0_i32, %c0_i32_0 : i32, i32
  }
  func.func @transform_4(%arg0: i32) -> (i32, i32) {
    %c0_i32 = arith.constant 0 : i32
    %c0_i32_0 = arith.constant 0 : i32
    %c0_i32_1 = arith.constant 0 : i32
    return %c0_i32, %c0_i32_0 : i32, i32
  }
  func.func @transform_5(%arg0: i32) -> (i32, i32) {
    %c0_i32 = arith.constant 0 : i32
    %c0_i32_0 = arith.constant 0 : i32
    %c0_i32_1 = arith.constant 0 : i32
    return %c0_i32, %c0_i32_0 : i32, i32
  }
  func.func @transform_6(%arg0: i32) -> (i32, i32) {
    %c0_i32 = arith.constant 0 : i32
    %c0_i32_0 = arith.constant 0 : i32
    %c0_i32_1 = arith.constant 0 : i32
    return %c0_i32, %c0_i32_0 : i32, i32
  }
  func.func @transform_7(%arg0: i32) -> (i32, i32, i32) {
    %c0_i32 = arith.constant 0 : i32
    %c0_i32_0 = arith.constant 0 : i32
    %c0_i32_1 = arith.constant 0 : i32
    return %arg0, %c0_i32, %c0_i32_0 : i32, i32, i32
  }
}

</mosaic_0001>

<llo_original>
// kernel: tpu_custom_call.1
$region0: #{tpu_custom_call.1}
  #allocation0 [shape = 'u32[]', space=smem, size = 0x4, offset = 0x4, fixed_abs, tag = 'smem constant byte address 0x4 - core index']
  #allocation1 [shape = 'u32[72,128]{1,0:T(1,128)}', space=vmem, size = 0x9000, scoped, tag = 'internal scratch']
  #allocation2 [shape = 'f32[1,1]{1,0:T(1,128)S(1)}', space=vmem, size = 0x200, scoped, tag = 'scoped memory for tpu_custom_call.1']
  %s0 = inlined_call_operand.vmem [shape: f32[8,32], index: 0, kind: input, shape index: {}]
  %s1 = inlined_call_operand.vmem [shape: f32[16,32], index: 1, kind: input, shape index: {}]
  %s2 = inlined_call_operand.vmem [shape: f32[16,1], index: 2, kind: input, shape index: {}]
  %s3 = inlined_call_operand.vmem [shape: f32[16,16], index: 3, kind: input, shape index: {}]
  %s4 = inlined_call_operand.vmem [shape: f32[16,1], index: 4, kind: input, shape index: {}]
  %s5 = inlined_call_operand.vmem [shape: f32[16,1], index: 5, kind: input, shape index: {}]
  %s6 = inlined_call_operand.<no memory space> [shape: f32[1,1], index: 6, kind: input, shape index: {}]
  %s7 = inlined_call_operand.hbm [shape: f32[1,1,128], index: 7, kind: output, shape index: {}]
  %s8 = sld [smem:[#allocation0]]
  $region38: #{tpu_custom_call.1} parent=0
    _
  %s10 = ssub.s32 1, %s8
  %s11 = scalar_select 0, %s10, %s8
  %v12 = vstv %s6
  %13 = vst [vmem:[#allocation2] sm:$0x1] %v12
  $region1: #{tpu_custom_call.1} parent=0
    #allocation3 [shape = 'u8[512]{0}', space=vmem, size = 0x400, scoped, tag = 'output window, operand 0, single buffered']
    #allocation4 [shape = 's32[1]{0}', space=sflag, size = 0x4, scoped, tag = 'scoped memory for tpu_custom_call.1']
    %14 = vsyncpa [#allocation4], 0
    // Predicated region
    $region2: #{tpu_custom_call.1} parent=1 // pred_check
      _
    $region3: #{tpu_custom_call.1} parent=1 // pred_check_branch
      %16 = sbr.rel (0) target = $region5
    $region4: #{tpu_custom_call.1} parent=1 // pred_region
      _
    $region5: #{tpu_custom_call.1} parent=1 // pred_fallthru
      _
    // Predicated region
    $region6: #{tpu_custom_call.1} parent=1 // pred_check
      _
    $region7: #{tpu_custom_call.1} parent=1 // pred_check_branch
      %18 = sbr.rel (0) target = $region9
    $region8: #{tpu_custom_call.1} parent=1 // pred_region
      _
    $region9: #{tpu_custom_call.1} parent=1 // pred_fallthru
      _
    // Predicated region
    $region10: #{tpu_custom_call.1} parent=1 // pred_check
      _
    $region11: #{tpu_custom_call.1} parent=1 // pred_check_branch
      %20 = sbr.rel (0) target = $region13
    $region12: #{tpu_custom_call.1} parent=1 // pred_region
      _
    $region13: #{tpu_custom_call.1} parent=1 // pred_fallthru
      _
    // Predicated region
    $region14: #{tpu_custom_call.1} parent=1 // pred_check
      _
    $region15: #{tpu_custom_call.1} parent=1 // pred_check_branch
      %22 = sbr.rel (0) target = $region17
    $region16: #{tpu_custom_call.1} parent=1 // pred_region
      _
    $region17: #{tpu_custom_call.1} parent=1 // pred_fallthru
      _
    // Predicated region
    $region18: #{tpu_custom_call.1} parent=1 // pred_check
      _
    $region19: #{tpu_custom_call.1} parent=1 // pred_check_branch
      %24 = sbr.rel (0) target = $region21
    $region20: #{tpu_custom_call.1} parent=1 // pred_region
      _
    $region21: #{tpu_custom_call.1} parent=1 // pred_fallthru
      _
    // Predicated region
    $region22: #{tpu_custom_call.1} parent=1 // pred_check
      _
    $region23: #{tpu_custom_call.1} parent=1 // pred_check_branch
      %26 = sbr.rel (0) target = $region25
    $region24: #{tpu_custom_call.1} parent=1 // pred_region
      _
    $region25: #{tpu_custom_call.1} parent=1 // pred_fallthru
      _
    // Predicated region
    $region26: #{tpu_custom_call.1} parent=1 // pred_check
      _
    $region27: #{tpu_custom_call.1} parent=1 // pred_check_branch
      %28 = sbr.rel (0) target = $region29
    $region28: #{tpu_custom_call.1} parent=1 // pred_region
      _
    $region29: #{tpu_custom_call.1} parent=1 // pred_fallthru
      _
    %v29 = vld [vmem:[%s0] sm:$0xff]
    %v30 = vld [vmem:[%s0 + $0x8] sm:$0xff]
    %v31 = vld [vmem:[%s0 + $0x10] sm:$0xff]
    %v32 = vld [vmem:[%s0 + $0x18] sm:$0xff]
    %v33 = vld [vmem:[%s0 + $0x20] sm:$0xff]
    %v34 = vld [vmem:[%s0 + $0x28] sm:$0xff]
    %v35 = vld [vmem:[%s0 + $0x30] sm:$0xff]
    %v36 = vld [vmem:[%s0 + $0x38] sm:$0xff]
    %v37 = vld [vmem:[%s0 + $0x40] sm:$0xff]
    %v38 = vld [vmem:[%s0 + $0x48] sm:$0xff]
    %v39 = vld [vmem:[%s0 + $0x50] sm:$0xff]
    %v40 = vld [vmem:[%s0 + $0x58] sm:$0xff]
    %v41 = vld [vmem:[%s0 + $0x60] sm:$0xff]
    %v42 = vld [vmem:[%s0 + $0x68] sm:$0xff]
    %v43 = vld [vmem:[%s0 + $0x70] sm:$0xff]
    %v44 = vld [vmem:[%s0 + $0x78] sm:$0xff]
    %v45 = vld [vmem:[%s1] sm:$0xff]
    %v46 = vld [vmem:[%s1 + $0x8] sm:$0xff]
    %v47 = vld [vmem:[%s2] sm:$0xff]
    %v48 = vld [vmem:[%s2 + $0x8] sm:$0xff]
    %50 = vset.pattern.permute.xlu0 0
    %51 = vperm.xlu0 %50, %v47
    %v52 = vpop.permute.xlu0 %51
    %55 = vset.pattern.permute.xlu0 0
    %56 = vperm.xlu0 %55, %v48
    %v57 = vpop.permute.xlu0 %56
    %vm59 = vcmask 261120
    %v61 = vsel %vm59, %v45, 0
    %v64 = vsel %vm59, %v46, 0
    %v67 = vsel %vm59, %v29, 0
    %v70 = vsel %vm59, %v30, 0
    %v73 = vsel %vm59, %v31, 0
    %v76 = vsel %vm59, %v32, 0
    %v79 = vsel %vm59, %v33, 0
    %v82 = vsel %vm59, %v34, 0
    %v85 = vsel %vm59, %v35, 0
    %v88 = vsel %vm59, %v36, 0
    %v91 = vsel %vm59, %v37, 0
    %v94 = vsel %vm59, %v38, 0
    %v97 = vsel %vm59, %v39, 0
    %v100 = vsel %vm59, %v40, 0
    %v103 = vsel %vm59, %v41, 0
    %v106 = vsel %vm59, %v42, 0
    %v109 = vsel %vm59, %v43, 0
    %v112 = vsel %vm59, %v44, 0
    %114 = vmatpush.xpose.msra.mxu0 %v112
    %115 = vmatpush.xpose.msra.mxu0 %v109
    %116 = vmatpush.xpose.msra.mxu0 %v106
    %117 = vmatpush.xpose.msra.mxu0 %v103
    %118 = vmatpush.xpose.msra.mxu0 %v100
    %119 = vmatpush.xpose.msra.mxu0 %v97
    %120 = vmatpush.xpose.msra.mxu0 %v94
    %121 = vmatpush.xpose.msra.mxu0 %v91
    %122 = vmatpush.xpose.msra.mxu0 %v88
    %123 = vmatpush.xpose.msra.mxu0 %v85
    %124 = vmatpush.xpose.msra.mxu0 %v82
    %125 = vmatpush.xpose.msra.mxu0 %v79
    %126 = vmatpush.xpose.msra.mxu0 %v76
    %127 = vmatpush.xpose.msra.mxu0 %v73
    %128 = vmatpush.xpose.msra.mxu0 %v70
    %129 = vmatpush.xpose.msra.mxu0 %v67
    %130 = vmatmul.f32.gmra.mxu0 %v61
    %v131 = vpop.f32.mrf.mxu0
    %v132 = vadd.f32 %v52, %v131
    %133 = vmatmul.f32.gmra.mxu0 %v64
    %v134 = vpop.f32.mrf.mxu0
    %v135 = vadd.f32 %v57, %v134
    %136 = vdwg.mxu0
    %v137 = vmax.f32 %v132, 0.0
    %v138 = vmax.f32 %v135, 0.0
    %v139 = vld [vmem:[%s3] sm:$0xff]
    %v140 = vld [vmem:[%s3 + $0x8] sm:$0xff]
    %v141 = vld [vmem:[%s4] sm:$0xff]
    %v142 = vld [vmem:[%s4 + $0x8] sm:$0xff]
    %144 = vset.pattern.permute.xlu0 0
    %145 = vperm.xlu0 %144, %v141
    %v146 = vpop.permute.xlu0 %145
    %149 = vset.pattern.permute.xlu0 0
    %150 = vperm.xlu0 %149, %v142
    %v151 = vpop.permute.xlu0 %150
    %vm153 = vcmask 130048
    %v155 = vsel %vm153, %v139, 0
    %v158 = vsel %vm153, %v140, 0
    %160 = vmatpush.msra.mxu0 0.0
    %161 = vmatpush.msra.mxu0 0.0
    %162 = vmatpush.msra.mxu0 0.0
    %163 = vmatpush.msra.mxu0 0.0
    %164 = vmatpush.msra.mxu0 0.0
    %165 = vmatpush.msra.mxu0 0.0
    %166 = vmatpush.msra.mxu0 0.0
    %167 = vmatpush.msra.mxu0 0.0
    %168 = vmatpush.msra.mxu0 0.0
    %169 = vmatpush.msra.mxu0 0.0
    %170 = vmatpush.msra.mxu0 0.0
    %171 = vmatpush.msra.mxu0 0.0
    %172 = vmatpush.msra.mxu0 0.0
    %173 = vmatpush.msra.mxu0 0.0
    %174 = vmatpush.msra.mxu0 %v138
    %175 = vmatpush.msra.mxu0 %v137
    %176 = vmatmul.f32.gmra.mxu0 %v155
    %v177 = vpop.f32.mrf.mxu0
    %v178 = vadd.f32 %v146, %v177
    %179 = vmatmul.f32.gmra.mxu0 %v158
    %v180 = vpop.f32.mrf.mxu0
    %v181 = vadd.f32 %v151, %v180
    %182 = vdwg.mxu0
    %v183 = vmax.f32 %v178, 0.0
    %v184 = vmax.f32 %v181, 0.0
    %v185 = vld [vmem:[%s5] sm:$0xff]
    %v186 = vld [vmem:[%s5 + $0x8] sm:$0xff]
    %188 = vset.pattern.permute.xlu0 0
    %189 = vperm.xlu0 %188, %v185
    %v190 = vpop.permute.xlu0 %189
    %193 = vset.pattern.permute.xlu0 0
    %194 = vperm.xlu0 %193, %v186
    %v195 = vpop.permute.xlu0 %194
    %v197 = vmul.f32 %v183, %v190
    %v198 = vmul.f32 %v184, %v195
    %v199 = vadd.f32 %v197, %v198
    %v200 = vrot.slane %v199, 4
    %v201 = vadd.f32 %v199, %v200
    %v202 = vrot.slane %v201, 2
    %v203 = vadd.f32 %v201, %v202
    %v204 = vrot.slane %v203, 1
    %v205 = vadd.f32 %v203, %v204
    %v206 = vld [vmem:[#allocation2] sm:$0x1]
    %208 = vset.pattern.permute.xlu0 0
    %209 = vperm.xlu0 %208, %v206
    %v210 = vpop.permute.xlu0 %209
    %v212 = vperm.slane %v210, 0
    %v213 = vadd.f32 %v205, %v212
    %214 = vst [vmem:[#allocation3] sm:$0x1] %v213
    // Predicated region
    $region30: #{tpu_custom_call.1} parent=1 // pred_check
      _
    $region31: #{tpu_custom_call.1} parent=1 // pred_check_branch
      %216 = sbr.rel (0) target = $region33
    $region32: #{tpu_custom_call.1} parent=1 // pred_region
      %218 = vsyncadd [#allocation4], 0
      %s220 = sshll.u32 [#allocation3], 4
      %s221 = int_to_ptr.vmem [resolvable:$true] %s220
      %s222 = sshll.u32 %s7, 4
      %s223 = int_to_ptr.hbm [resolvable:$true] %s222
      %225 = dma.vmem_to_hbm [thread:$0]  %s221, 16, %s223, [#allocation4]
    $region33: #{tpu_custom_call.1} parent=1 // pred_fallthru
      _
    // Predicated region
    $region34: #{tpu_custom_call.1} parent=1 // pred_check
      _
    $region35: #{tpu_custom_call.1} parent=1 // pred_check_branch
      %227 = sbr.rel (0) target = $region37
    $region36: #{tpu_custom_call.1} parent=1 // pred_region
      %229 = dma.done [#allocation4], 16
    $region37: #{tpu_custom_call.1} parent=1 // pred_fallthru
      _
    %230 = vsyncpa [#allocation4], 1

</llo_original>
